<compile_context>
chip_gen: v6e
topology: v6e:2x2x1
jax: 0.10.0
libtpu: 0.0.40
codegen_flags: <defaults>
</compile_context>

<pallas_src>
import jax
import jax.numpy as jnp
from jax import lax
from jax.experimental import pallas as pl
from jax.experimental.pallas import tpu as pltpu

NUM_LAYERS = 2
LN_EPS = 1e-5   # nn.LayerNorm default eps
L2_EPS = 1e-12  # F.normalize default eps


def _round_up(x, m):
    return (x + m - 1) // m * m


def _layernorm(h, gamma, beta):
    # Two independent reductions (overlap on the XLU) instead of the serial
    # mean -> broadcast-subtract -> square -> mean chain.
    inv_n = 1.0 / h.shape[-1]
    s1 = jnp.sum(h, axis=-1, keepdims=True)
    s2 = jnp.sum(h * h, axis=-1, keepdims=True)
    mu = s1 * inv_n
    var = s2 * inv_n - mu * mu          # biased variance, as in nn.LayerNorm
    return (h - mu) * lax.rsqrt(var + LN_EPS) * gamma + beta


# ---------------------------------------------------------------------------
# Host-side parameter fusion + packing (done once, reused across calls)
# ---------------------------------------------------------------------------
def pack_params(params):
    """Fuse attention offline and pack parameters into three contiguous slabs.

    Returns (wa_slab, wb_slab, b_slab, wa_off, wb_off, b_off) where
      w*_off[name] = (row_start, n_rows, n_cols) into the bf16 weight slab,
      b_off[name]  = (row_index, n_cols)         into the f32 bias slab.
    All weight row offsets are multiples of 16 (bf16 sublane-pack aligned).
    """
    w_in, b_in = params[0], params[1]
    w_out, b_out, g_f, bt_f = params[-4:]
    H = int(w_in.shape[1])
    eye = jnp.eye(H, dtype=jnp.float32)

    narrow = [("in", w_in)]          # cols <= H
    wide = []                        # ff1 weights, cols == 4*H
    vectors = [("b_in", b_in)]
    for l in range(NUM_LAYERS):
        (wv, bv, wo, bo, w1, b1, w2, b2, g1, be1, g2, be2) = \
            params[2 + 12 * l: 2 + 12 * (l + 1)]
        # seq_len == 1 => softmax over one key is exactly 1, so
        #   MHA(x) == x @ (Wv @ Wo) + (bv @ Wo + bo);
        # residual connection folded in as "+ I" (exact algebraic fold).
        w_attn = wv @ wo + eye
        b_attn = bv @ wo + bo
        narrow += [(f"attn{l}", w_attn), (f"ff2{l}", w2)]
        wide += [(f"ff1{l}", w1)]
        vectors += [(f"b_attn{l}", b_attn), (f"b1{l}", b1), (f"b2{l}", b2),
                    (f"g1{l}", g1), (f"be1{l}", be1), (f"g2{l}", g2), (f"be2{l}", be2)]
    narrow += [("out", w_out)]
    vectors += [("b_out", b_out), ("g_f", g_f), ("b_f", bt_f)]

    def build_slab(weights):
        cols = max(int(w.shape[1]) for _, w in weights)
        off, rows, blocks = {}, 0, []
        for name, w in weights:
            r, c = int(w.shape[0]), int(w.shape[1])
            off[name] = (rows, r, c)
            blk = jnp.zeros((_round_up(r, 16), cols), jnp.float32).at[:r, :c].set(w)
            blocks.append(blk)
            rows += blk.shape[0]
        return jnp.concatenate(blocks, axis=0).astype(jnp.bfloat16), off

    wa_slab, wa_off = build_slab(narrow)
    wb_slab, wb_off = build_slab(wide)

    bcols = max(int(v.shape[1]) for _, v in vectors)
    b_off = {}
    b_slab = jnp.zeros((_round_up(len(vectors), 8), bcols), jnp.float32)
    for i, (name, v) in enumerate(vectors):
        c = int(v.shape[1])
        b_off[name] = (i, c)
        b_slab = b_slab.at[i, :c].set(v.reshape(-1))
    return wa_slab, wb_slab, b_slab, wa_off, wb_off, b_off


# ---------------------------------------------------------------------------
# Kernel
# ---------------------------------------------------------------------------
def _make_kernel(wa_off, wb_off, b_off):
    def sl(ref, off, name):
        r0, nr, nc = off[name]
        return ref[r0:r0 + nr, :nc]          # static slice of resident VMEM slab

    def vec(ref, name):
        r, nc = b_off[name]
        return ref[r:r + 1, :nc]             # (1, nc) row, broadcasts over batch

    def mm(h, w_bf16):
        # bf16 MXU operands, f32 accumulation.
        return jnp.dot(h.astype(jnp.bfloat16), w_bf16,
                       preferred_element_type=jnp.float32)

    def kernel(x_ref, wa_ref, wb_ref, b_ref, out_ref):
        h = mm(x_ref[...], sl(wa_ref, wa_off, "in")) + vec(b_ref, "b_in")
        for l in range(NUM_LAYERS):
            # Attention (+ its residual, folded into the weight on the host).
            # TODO(synk): dropout layers are treated as identity (inference mode).
            h = _layernorm(
                mm(h, sl(wa_ref, wa_off, f"attn{l}")) + vec(b_ref, f"b_attn{l}"),
                vec(b_ref, f"g1{l}"), vec(b_ref, f"be1{l}"))
            ff = jnp.maximum(
                mm(h, sl(wb_ref, wb_off, f"ff1{l}")) + vec(b_ref, f"b1{l}"), 0.0)
            ff = mm(ff, sl(wa_ref, wa_off, f"ff2{l}")) + vec(b_ref, f"b2{l}")
            h = _layernorm(h + ff, vec(b_ref, f"g2{l}"), vec(b_ref, f"be2{l}"))
        o = mm(h, sl(wa_ref, wa_off, "out")) + vec(b_ref, "b_out")
        o = _layernorm(o, vec(b_ref, "g_f"), vec(b_ref, "b_f"))
        # F.normalize(p=2, dim=1): x / max(||x||, eps) == x * rsqrt(max(||x||^2, eps^2))
        ss = jnp.sum(o * o, axis=-1, keepdims=True)
        out_ref[...] = o * lax.rsqrt(jnp.maximum(ss, L2_EPS * L2_EPS))

    return kernel


def transformer_encoder(x, packed, *, batch_tile=2048):
    """x: (B, input_size). packed: output of pack_params()."""
    wa_slab, wb_slab, b_slab, wa_off, wb_off, b_off = packed
    _, input_size, H = wa_off["in"]
    HO = wa_off["out"][2]
    FF = wb_slab.shape[1]
    B = x.shape[0]
    assert x.shape[1] == input_size

    # The kernel casts activations to bf16 before every matmul, so feeding x as
    # bf16 is bit-identical for the math and halves the dominant HBM stream.
    x = x.astype(jnp.bfloat16)

    # --- batch-tile / VMEM sizing ------------------------------------------
    # Per-row VMEM bytes: double-buffered x (bf16) & out (f32) blocks plus the
    # compiler-managed f32/bf16 activation temporaries (h, ff, bf16 copies).
    per_row = 4 * input_size + 8 * HO + 16 * H + 6 * FF
    slab_bytes = 2 * (wa_slab.size + wb_slab.size) + 4 * b_slab.size
    act_budget = 32 * 1024 * 1024            # safe on v5e (16 MiB default scoped)
    tb_cap = max(16, (act_budget // per_row) // 16 * 16)
    tb = min(batch_tile, tb_cap)
    if B <= tb:
        # Guarantee >= 2 grid steps for big-enough batches so the "parallel"
        # axis can shard across both TensorCores on v7x (partial tiles are
        # multiples of 16 rows; last tile is padded & masked on writeback).
        half = _round_up((B + 1) // 2, 16)
        tb = half if (B >= 64 and half < B) else B
    grid = (pl.cdiv(B, tb),)

    vmem_limit = int(min(max(tb * per_row + 2 * slab_bytes + (4 << 20), 32 << 20),
                         48 << 20))

    kernel = _make_kernel(wa_off, wb_off, b_off)
    return pl.pallas_call(
        kernel,
        out_shape=jax.ShapeDtypeStruct((B, HO), jnp.float32),
        grid=grid,
        in_specs=[
            pl.BlockSpec((tb, input_size), lambda i: (i, 0)),
            # Constant index_map: slabs stay resident in VMEM across grid steps.
            pl.BlockSpec(wa_slab.shape, lambda i: (0, 0)),
            pl.BlockSpec(wb_slab.shape, lambda i: (0, 0)),
            pl.BlockSpec(b_slab.shape, lambda i: (0, 0)),
        ],
        out_specs=pl.BlockSpec((tb, HO), lambda i: (i, 0)),
        compiler_params=pltpu.CompilerParams(
            dimension_semantics=("parallel",),
            vmem_limit_bytes=vmem_limit),
    )(x, wa_slab, wb_slab, b_slab)


# ---------------------------------------------------------------------------
# Synthetic parameters + plain-JAX reference (PyTorch-faithful, unfused, f32)
# ---------------------------------------------------------------------------
def init_params(key, input_size, hidden_size):
    """Deterministic synthetic parameters matching the module's shapes (pre-transposed)."""
    H, FF, HO = hidden_size, 4 * hidden_size, hidden_size // 2

    def lin(k, fan_in, fan_out):
        kw, kb = jax.random.split(k)
        w = jax.random.normal(kw, (fan_in, fan_out), jnp.float32) * 0.02
        b = jax.random.normal(kb, (1, fan_out), jnp.float32) * 0.02
        return w, b

    keys = jax.random.split(key, 3 + NUM_LAYERS)
    params = []
    w_in, b_in = lin(keys[0], input_size, H)
    params += [w_in, b_in]
    for l in range(NUM_LAYERS):
        lk = jax.random.split(keys[1 + l], 4)
        wv, bv = lin(lk[0], H, H)    # value slice of in_proj (q/k unused: seq_len == 1)
        wo, bo = lin(lk[1], H, H)    # attn out_proj
        w1, b1 = lin(lk[2], H, FF)   # linear1
        w2, b2 = lin(lk[3], FF, H)   # linear2
        g1 = jnp.ones((1, H), jnp.float32); be1 = jnp.zeros((1, H), jnp.float32)
        g2 = jnp.ones((1, H), jnp.float32); be2 = jnp.zeros((1, H), jnp.float32)
        params += [wv, bv, wo, bo, w1, b1, w2, b2, g1, be1, g2, be2]
    w_out, b_out = lin(keys[-1], H, HO)
    g_f = jnp.ones((1, HO), jnp.float32); b_f = jnp.zeros((1, HO), jnp.float32)
    params += [w_out, b_out, g_f, b_f]
    return params


def reference(x, params):
    """Plain-JAX f32 reference of the same math (unfused) for a sanity check."""
    def ln(h, g, b):
        mu = h.mean(-1, keepdims=True)
        var = ((h - mu) ** 2).mean(-1, keepdims=True)
        return (h - mu) / jnp.sqrt(var + LN_EPS) * g + b

    w_in, b_in = params[0], params[1]
    h = x @ w_in + b_in
    for l in range(NUM_LAYERS):
        wv, bv, wo, bo, w1, b1, w2, b2, g1, be1, g2, be2 = params[2 + 12 * l: 2 + 12 * (l + 1)]
        attn = (h @ wv + bv) @ wo + bo
        h = ln(h + attn, g1, be1)
        ff = jnp.maximum(h @ w1 + b1, 0.0) @ w2 + b2
        h = ln(h + ff, g2, be2)
    w_out, b_out, g_f, b_f = params[-4:]
    o = ln(h @ w_out + b_out, g_f, b_f)
    return o / jnp.maximum(jnp.sqrt((o * o).sum(-1, keepdims=True)), L2_EPS)


if __name__ == "__main__":
    # Small shapes consistent with the module: x is (batch, input_size) of features.
    B, INPUT_SIZE, HIDDEN = 8, 112, 64
    key = jax.random.PRNGKey(0)
    kx, kp = jax.random.split(key)
    x = jax.random.normal(kx, (B, INPUT_SIZE), jnp.float32)
    params = init_params(kp, INPUT_SIZE, HIDDEN)

    packed = pack_params(params)              # fuse + pack once, reuse across calls
    out = transformer_encoder(x, packed)
    out = jax.block_until_ready(out)

    assert out.shape == (B, HIDDEN // 2), out.shape
    ref = reference(x, params)
    max_err = float(jnp.max(jnp.abs(out - ref)))
    # bf16 weights/activations vs f32 reference: tolerance covers MXU quantization.
    assert jnp.allclose(out, ref, atol=2e-2, rtol=2e-2), max_err
    print("KERNEL_OK")
</pallas_src>

<mosaic_0001>
module attributes {stable_mosaic.version = 11 : i64} {
  func.func @kernel(%arg0: i32, %arg1: memref<8x112xbf16, #tpu.memory_space<vmem>>, %arg2: memref<816x64xbf16, #tpu.memory_space<vmem>>, %arg3: memref<128x256xbf16, #tpu.memory_space<vmem>>, %arg4: memref<24x256xf32, #tpu.memory_space<vmem>>, %arg5: memref<8x32xf32, #tpu.memory_space<vmem>>) attributes {dimension_semantics = [#tpu.dimension_semantics<parallel>], iteration_bounds = array<i64: 1>, scalar_prefetch = 0 : i64, scratch_operands = 0 : i64, tpu.core_type = #tpu.core_type<tc>, window_params = [{transform_indices = @transform_0, window_bounds = array<i64: 8, 112>}, {pipeline_mode = #tpu.pipeline_mode<synchronous>, transform_indices = @transform_1, window_bounds = array<i64: 816, 64>}, {pipeline_mode = #tpu.pipeline_mode<synchronous>, transform_indices = @transform_2, window_bounds = array<i64: 128, 256>}, {pipeline_mode = #tpu.pipeline_mode<synchronous>, transform_indices = @transform_3, window_bounds = array<i64: 24, 256>}, {transform_indices = @transform_4, window_bounds = array<i64: 8, 32>}]} {
    %c0 = arith.constant 0 : index
    %c0_0 = arith.constant 0 : index
    %0 = vector.load %arg1[%c0, %c0_0] : memref<8x112xbf16, #tpu.memory_space<vmem>>, vector<8x112xbf16>
    %c0_1 = arith.constant 0 : index
    %c0_2 = arith.constant 0 : index
    %1 = vector.load %arg2[%c0_1, %c0_2] : memref<816x64xbf16, #tpu.memory_space<vmem>>, vector<112x64xbf16>
    %cst = arith.constant dense<0.000000e+00> : vector<8x64xf32>
    %2 = tpu.matmul %0, %1, %cst {dimension_numbers = #tpu.dot_dimension_numbers<[1], [0], [0], [1], [0, 0, 1, 1], [], []>} : vector<8x112xbf16>, vector<112x64xbf16>, vector<8x64xf32> -> vector<8x64xf32>
    %c0_3 = arith.constant 0 : index
    %c0_4 = arith.constant 0 : index
    %3 = vector.load %arg4[%c0_3, %c0_4] : memref<24x256xf32, #tpu.memory_space<vmem>>, vector<1x64xf32>
    %4 = vector.broadcast %3 : vector<1x64xf32> to vector<8x64xf32>
    %5 = arith.addf %2, %4 : vector<8x64xf32>
    %c112 = arith.constant 112 : index
    %c0_5 = arith.constant 0 : index
    %6 = vector.load %arg2[%c112, %c0_5] : memref<816x64xbf16, #tpu.memory_space<vmem>>, vector<64x64xbf16>
    %7 = arith.truncf %5 : vector<8x64xf32> to vector<8x64xbf16>
    %cst_6 = arith.constant dense<0.000000e+00> : vector<8x64xf32>
    %8 = tpu.matmul %7, %6, %cst_6 {dimension_numbers = #tpu.dot_dimension_numbers<[1], [0], [0], [1], [0, 0, 1, 1], [], []>} : vector<8x64xbf16>, vector<64x64xbf16>, vector<8x64xf32> -> vector<8x64xf32>
    %c1 = arith.constant 1 : index
    %c0_7 = arith.constant 0 : index
    %9 = vector.load %arg4[%c1, %c0_7] : memref<24x256xf32, #tpu.memory_space<vmem>>, vector<1x64xf32>
    %10 = vector.broadcast %9 : vector<1x64xf32> to vector<8x64xf32>
    %11 = arith.addf %8, %10 : vector<8x64xf32>
    %c4 = arith.constant 4 : index
    %c0_8 = arith.constant 0 : index
    %12 = vector.load %arg4[%c4, %c0_8] : memref<24x256xf32, #tpu.memory_space<vmem>>, vector<1x64xf32>
    %c5 = arith.constant 5 : index
    %c0_9 = arith.constant 0 : index
    %13 = vector.load %arg4[%c5, %c0_9] : memref<24x256xf32, #tpu.memory_space<vmem>>, vector<1x64xf32>
    %cst_10 = arith.constant dense<0.000000e+00> : vector<8xf32>
    %14 = vector.multi_reduction <add>, %11, %cst_10 [1] : vector<8x64xf32> to vector<8xf32>
    %15 = vector.shape_cast %14 : vector<8xf32> to vector<8x1xf32>
    %16 = arith.mulf %11, %11 : vector<8x64xf32>
    %cst_11 = arith.constant dense<0.000000e+00> : vector<8xf32>
    %17 = vector.multi_reduction <add>, %16, %cst_11 [1] : vector<8x64xf32> to vector<8xf32>
    %18 = vector.shape_cast %17 : vector<8xf32> to vector<8x1xf32>
    %cst_12 = arith.constant 1.562500e-02 : f32
    %19 = vector.broadcast %cst_12 : f32 to vector<8x1xf32>
    %20 = arith.mulf %15, %19 : vector<8x1xf32>
    %cst_13 = arith.constant 1.562500e-02 : f32
    %21 = vector.broadcast %cst_13 : f32 to vector<8x1xf32>
    %22 = arith.mulf %18, %21 : vector<8x1xf32>
    %23 = arith.mulf %20, %20 : vector<8x1xf32>
    %24 = arith.subf %22, %23 : vector<8x1xf32>
    %25 = vector.broadcast %20 : vector<8x1xf32> to vector<8x64xf32>
    %26 = arith.subf %11, %25 : vector<8x64xf32>
    %cst_14 = arith.constant 9.99999974E-6 : f32
    %27 = vector.broadcast %cst_14 : f32 to vector<8x1xf32>
    %28 = arith.addf %24, %27 : vector<8x1xf32>
    %29 = math.rsqrt %28 : vector<8x1xf32>
    %30 = vector.broadcast %29 : vector<8x1xf32> to vector<8x64xf32>
    %31 = arith.mulf %26, %30 : vector<8x64xf32>
    %32 = vector.broadcast %12 : vector<1x64xf32> to vector<8x64xf32>
    %33 = arith.mulf %31, %32 : vector<8x64xf32>
    %34 = vector.broadcast %13 : vector<1x64xf32> to vector<8x64xf32>
    %35 = arith.addf %33, %34 : vector<8x64xf32>
    %c0_15 = arith.constant 0 : index
    %c0_16 = arith.constant 0 : index
    %36 = vector.load %arg3[%c0_15, %c0_16] : memref<128x256xbf16, #tpu.memory_space<vmem>>, vector<64x256xbf16>
    %37 = arith.truncf %35 : vector<8x64xf32> to vector<8x64xbf16>
    %cst_17 = arith.constant dense<0.000000e+00> : vector<8x256xf32>
    %38 = tpu.matmul %37, %36, %cst_17 {dimension_numbers = #tpu.dot_dimension_numbers<[1], [0], [0], [1], [0, 0, 1, 1], [], []>} : vector<8x64xbf16>, vector<64x256xbf16>, vector<8x256xf32> -> vector<8x256xf32>
    %c2 = arith.constant 2 : index
    %c0_18 = arith.constant 0 : index
    %39 = vector.load %arg4[%c2, %c0_18] : memref<24x256xf32, #tpu.memory_space<vmem>>, vector<1x256xf32>
    %40 = vector.broadcast %39 : vector<1x256xf32> to vector<8x256xf32>
    %41 = arith.addf %38, %40 : vector<8x256xf32>
    %cst_19 = arith.constant 0.000000e+00 : f32
    %42 = vector.broadcast %cst_19 : f32 to vector<8x256xf32>
    %43 = arith.maximumf %41, %42 : vector<8x256xf32>
    %c176 = arith.constant 176 : index
    %c0_20 = arith.constant 0 : index
    %44 = vector.load %arg2[%c176, %c0_20] : memref<816x64xbf16, #tpu.memory_space<vmem>>, vector<256x64xbf16>
    %45 = arith.truncf %43 : vector<8x256xf32> to vector<8x256xbf16>
    %cst_21 = arith.constant dense<0.000000e+00> : vector<8x64xf32>
    %46 = tpu.matmul %45, %44, %cst_21 {dimension_numbers = #tpu.dot_dimension_numbers<[1], [0], [0], [1], [0, 0, 1, 1], [], []>} : vector<8x256xbf16>, vector<256x64xbf16>, vector<8x64xf32> -> vector<8x64xf32>
    %c3 = arith.constant 3 : index
    %c0_22 = arith.constant 0 : index
    %47 = vector.load %arg4[%c3, %c0_22] : memref<24x256xf32, #tpu.memory_space<vmem>>, vector<1x64xf32>
    %48 = vector.broadcast %47 : vector<1x64xf32> to vector<8x64xf32>
    %49 = arith.addf %46, %48 : vector<8x64xf32>
    %50 = arith.addf %35, %49 : vector<8x64xf32>
    %c6 = arith.constant 6 : index
    %c0_23 = arith.constant 0 : index
    %51 = vector.load %arg4[%c6, %c0_23] : memref<24x256xf32, #tpu.memory_space<vmem>>, vector<1x64xf32>
    %c7 = arith.constant 7 : index
    %c0_24 = arith.constant 0 : index
    %52 = vector.load %arg4[%c7, %c0_24] : memref<24x256xf32, #tpu.memory_space<vmem>>, vector<1x64xf32>
    %cst_25 = arith.constant dense<0.000000e+00> : vector<8xf32>
    %53 = vector.multi_reduction <add>, %50, %cst_25 [1] : vector<8x64xf32> to vector<8xf32>
    %54 = vector.shape_cast %53 : vector<8xf32> to vector<8x1xf32>
    %55 = arith.mulf %50, %50 : vector<8x64xf32>
    %cst_26 = arith.constant dense<0.000000e+00> : vector<8xf32>
    %56 = vector.multi_reduction <add>, %55, %cst_26 [1] : vector<8x64xf32> to vector<8xf32>
    %57 = vector.shape_cast %56 : vector<8xf32> to vector<8x1xf32>
    %cst_27 = arith.constant 1.562500e-02 : f32
    %58 = vector.broadcast %cst_27 : f32 to vector<8x1xf32>
    %59 = arith.mulf %54, %58 : vector<8x1xf32>
    %cst_28 = arith.constant 1.562500e-02 : f32
    %60 = vector.broadcast %cst_28 : f32 to vector<8x1xf32>
    %61 = arith.mulf %57, %60 : vector<8x1xf32>
    %62 = arith.mulf %59, %59 : vector<8x1xf32>
    %63 = arith.subf %61, %62 : vector<8x1xf32>
    %64 = vector.broadcast %59 : vector<8x1xf32> to vector<8x64xf32>
    %65 = arith.subf %50, %64 : vector<8x64xf32>
    %cst_29 = arith.constant 9.99999974E-6 : f32
    %66 = vector.broadcast %cst_29 : f32 to vector<8x1xf32>
    %67 = arith.addf %63, %66 : vector<8x1xf32>
    %68 = math.rsqrt %67 : vector<8x1xf32>
    %69 = vector.broadcast %68 : vector<8x1xf32> to vector<8x64xf32>
    %70 = arith.mulf %65, %69 : vector<8x64xf32>
    %71 = vector.broadcast %51 : vector<1x64xf32> to vector<8x64xf32>
    %72 = arith.mulf %70, %71 : vector<8x64xf32>
    %73 = vector.broadcast %52 : vector<1x64xf32> to vector<8x64xf32>
    %74 = arith.addf %72, %73 : vector<8x64xf32>
    %c432 = arith.constant 432 : index
    %c0_30 = arith.constant 0 : index
    %75 = vector.load %arg2[%c432, %c0_30] : memref<816x64xbf16, #tpu.memory_space<vmem>>, vector<64x64xbf16>
    %76 = arith.truncf %74 : vector<8x64xf32> to vector<8x64xbf16>
    %cst_31 = arith.constant dense<0.000000e+00> : vector<8x64xf32>
    %77 = tpu.matmul %76, %75, %cst_31 {dimension_numbers = #tpu.dot_dimension_numbers<[1], [0], [0], [1], [0, 0, 1, 1], [], []>} : vector<8x64xbf16>, vector<64x64xbf16>, vector<8x64xf32> -> vector<8x64xf32>
    %c8 = arith.constant 8 : index
    %c0_32 = arith.constant 0 : index
    %78 = vector.load %arg4[%c8, %c0_32] : memref<24x256xf32, #tpu.memory_space<vmem>>, vector<1x64xf32>
    %79 = vector.broadcast %78 : vector<1x64xf32> to vector<8x64xf32>
    %80 = arith.addf %77, %79 : vector<8x64xf32>
    %c11 = arith.constant 11 : index
    %c0_33 = arith.constant 0 : index
    %81 = vector.load %arg4[%c11, %c0_33] : memref<24x256xf32, #tpu.memory_space<vmem>>, vector<1x64xf32>
    %c12 = arith.constant 12 : index
    %c0_34 = arith.constant 0 : index
    %82 = vector.load %arg4[%c12, %c0_34] : memref<24x256xf32, #tpu.memory_space<vmem>>, vector<1x64xf32>
    %cst_35 = arith.constant dense<0.000000e+00> : vector<8xf32>
    %83 = vector.multi_reduction <add>, %80, %cst_35 [1] : vector<8x64xf32> to vector<8xf32>
    %84 = vector.shape_cast %83 : vector<8xf32> to vector<8x1xf32>
    %85 = arith.mulf %80, %80 : vector<8x64xf32>
    %cst_36 = arith.constant dense<0.000000e+00> : vector<8xf32>
    %86 = vector.multi_reduction <add>, %85, %cst_36 [1] : vector<8x64xf32> to vector<8xf32>
    %87 = vector.shape_cast %86 : vector<8xf32> to vector<8x1xf32>
    %cst_37 = arith.constant 1.562500e-02 : f32
    %88 = vector.broadcast %cst_37 : f32 to vector<8x1xf32>
    %89 = arith.mulf %84, %88 : vector<8x1xf32>
    %cst_38 = arith.constant 1.562500e-02 : f32
    %90 = vector.broadcast %cst_38 : f32 to vector<8x1xf32>
    %91 = arith.mulf %87, %90 : vector<8x1xf32>
    %92 = arith.mulf %89, %89 : vector<8x1xf32>
    %93 = arith.subf %91, %92 : vector<8x1xf32>
    %94 = vector.broadcast %89 : vector<8x1xf32> to vector<8x64xf32>
    %95 = arith.subf %80, %94 : vector<8x64xf32>
    %cst_39 = arith.constant 9.99999974E-6 : f32
    %96 = vector.broadcast %cst_39 : f32 to vector<8x1xf32>
    %97 = arith.addf %93, %96 : vector<8x1xf32>
    %98 = math.rsqrt %97 : vector<8x1xf32>
    %99 = vector.broadcast %98 : vector<8x1xf32> to vector<8x64xf32>
    %100 = arith.mulf %95, %99 : vector<8x64xf32>
    %101 = vector.broadcast %81 : vector<1x64xf32> to vector<8x64xf32>
    %102 = arith.mulf %100, %101 : vector<8x64xf32>
    %103 = vector.broadcast %82 : vector<1x64xf32> to vector<8x64xf32>
    %104 = arith.addf %102, %103 : vector<8x64xf32>
    %c64 = arith.constant 64 : index
    %c0_40 = arith.constant 0 : index
    %105 = vector.load %arg3[%c64, %c0_40] : memref<128x256xbf16, #tpu.memory_space<vmem>>, vector<64x256xbf16>
    %106 = arith.truncf %104 : vector<8x64xf32> to vector<8x64xbf16>
    %cst_41 = arith.constant dense<0.000000e+00> : vector<8x256xf32>
    %107 = tpu.matmul %106, %105, %cst_41 {dimension_numbers = #tpu.dot_dimension_numbers<[1], [0], [0], [1], [0, 0, 1, 1], [], []>} : vector<8x64xbf16>, vector<64x256xbf16>, vector<8x256xf32> -> vector<8x256xf32>
    %c9 = arith.constant 9 : index
    %c0_42 = arith.constant 0 : index
    %108 = vector.load %arg4[%c9, %c0_42] : memref<24x256xf32, #tpu.memory_space<vmem>>, vector<1x256xf32>
    %109 = vector.broadcast %108 : vector<1x256xf32> to vector<8x256xf32>
    %110 = arith.addf %107, %109 : vector<8x256xf32>
    %cst_43 = arith.constant 0.000000e+00 : f32
    %111 = vector.broadcast %cst_43 : f32 to vector<8x256xf32>
    %112 = arith.maximumf %110, %111 : vector<8x256xf32>
    %c496 = arith.constant 496 : index
    %c0_44 = arith.constant 0 : index
    %113 = vector.load %arg2[%c496, %c0_44] : memref<816x64xbf16, #tpu.memory_space<vmem>>, vector<256x64xbf16>
    %114 = arith.truncf %112 : vector<8x256xf32> to vector<8x256xbf16>
    %cst_45 = arith.constant dense<0.000000e+00> : vector<8x64xf32>
    %115 = tpu.matmul %114, %113, %cst_45 {dimension_numbers = #tpu.dot_dimension_numbers<[1], [0], [0], [1], [0, 0, 1, 1], [], []>} : vector<8x256xbf16>, vector<256x64xbf16>, vector<8x64xf32> -> vector<8x64xf32>
    %c10 = arith.constant 10 : index
    %c0_46 = arith.constant 0 : index
    %116 = vector.load %arg4[%c10, %c0_46] : memref<24x256xf32, #tpu.memory_space<vmem>>, vector<1x64xf32>
    %117 = vector.broadcast %116 : vector<1x64xf32> to vector<8x64xf32>
    %118 = arith.addf %115, %117 : vector<8x64xf32>
    %119 = arith.addf %104, %118 : vector<8x64xf32>
    %c13 = arith.constant 13 : index
    %c0_47 = arith.constant 0 : index
    %120 = vector.load %arg4[%c13, %c0_47] : memref<24x256xf32, #tpu.memory_space<vmem>>, vector<1x64xf32>
    %c14 = arith.constant 14 : index
    %c0_48 = arith.constant 0 : index
    %121 = vector.load %arg4[%c14, %c0_48] : memref<24x256xf32, #tpu.memory_space<vmem>>, vector<1x64xf32>
    %cst_49 = arith.constant dense<0.000000e+00> : vector<8xf32>
    %122 = vector.multi_reduction <add>, %119, %cst_49 [1] : vector<8x64xf32> to vector<8xf32>
    %123 = vector.shape_cast %122 : vector<8xf32> to vector<8x1xf32>
    %124 = arith.mulf %119, %119 : vector<8x64xf32>
    %cst_50 = arith.constant dense<0.000000e+00> : vector<8xf32>
    %125 = vector.multi_reduction <add>, %124, %cst_50 [1] : vector<8x64xf32> to vector<8xf32>
    %126 = vector.shape_cast %125 : vector<8xf32> to vector<8x1xf32>
    %cst_51 = arith.constant 1.562500e-02 : f32
    %127 = vector.broadcast %cst_51 : f32 to vector<8x1xf32>
    %128 = arith.mulf %123, %127 : vector<8x1xf32>
    %cst_52 = arith.constant 1.562500e-02 : f32
    %129 = vector.broadcast %cst_52 : f32 to vector<8x1xf32>
    %130 = arith.mulf %126, %129 : vector<8x1xf32>
    %131 = arith.mulf %128, %128 : vector<8x1xf32>
    %132 = arith.subf %130, %131 : vector<8x1xf32>
    %133 = vector.broadcast %128 : vector<8x1xf32> to vector<8x64xf32>
    %134 = arith.subf %119, %133 : vector<8x64xf32>
    %cst_53 = arith.constant 9.99999974E-6 : f32
    %135 = vector.broadcast %cst_53 : f32 to vector<8x1xf32>
    %136 = arith.addf %132, %135 : vector<8x1xf32>
    %137 = math.rsqrt %136 : vector<8x1xf32>
    %138 = vector.broadcast %137 : vector<8x1xf32> to vector<8x64xf32>
    %139 = arith.mulf %134, %138 : vector<8x64xf32>
    %140 = vector.broadcast %120 : vector<1x64xf32> to vector<8x64xf32>
    %141 = arith.mulf %139, %140 : vector<8x64xf32>
    %142 = vector.broadcast %121 : vector<1x64xf32> to vector<8x64xf32>
    %143 = arith.addf %141, %142 : vector<8x64xf32>
    %c752 = arith.constant 752 : index
    %c0_54 = arith.constant 0 : index
    %144 = vector.load %arg2[%c752, %c0_54] : memref<816x64xbf16, #tpu.memory_space<vmem>>, vector<64x32xbf16>
    %145 = arith.truncf %143 : vector<8x64xf32> to vector<8x64xbf16>
    %cst_55 = arith.constant dense<0.000000e+00> : vector<8x32xf32>
    %146 = tpu.matmul %145, %144, %cst_55 {dimension_numbers = #tpu.dot_dimension_numbers<[1], [0], [0], [1], [0, 0, 1, 1], [], []>} : vector<8x64xbf16>, vector<64x32xbf16>, vector<8x32xf32> -> vector<8x32xf32>
    %c15 = arith.constant 15 : index
    %c0_56 = arith.constant 0 : index
    %147 = vector.load %arg4[%c15, %c0_56] : memref<24x256xf32, #tpu.memory_space<vmem>>, vector<1x32xf32>
    %148 = vector.broadcast %147 : vector<1x32xf32> to vector<8x32xf32>
    %149 = arith.addf %146, %148 : vector<8x32xf32>
    %c16 = arith.constant 16 : index
    %c0_57 = arith.constant 0 : index
    %150 = vector.load %arg4[%c16, %c0_57] : memref<24x256xf32, #tpu.memory_space<vmem>>, vector<1x32xf32>
    %c17 = arith.constant 17 : index
    %c0_58 = arith.constant 0 : index
    %151 = vector.load %arg4[%c17, %c0_58] : memref<24x256xf32, #tpu.memory_space<vmem>>, vector<1x32xf32>
    %cst_59 = arith.constant dense<0.000000e+00> : vector<8xf32>
    %152 = vector.multi_reduction <add>, %149, %cst_59 [1] : vector<8x32xf32> to vector<8xf32>
    %153 = vector.shape_cast %152 : vector<8xf32> to vector<8x1xf32>
    %154 = arith.mulf %149, %149 : vector<8x32xf32>
    %cst_60 = arith.constant dense<0.000000e+00> : vector<8xf32>
    %155 = vector.multi_reduction <add>, %154, %cst_60 [1] : vector<8x32xf32> to vector<8xf32>
    %156 = vector.shape_cast %155 : vector<8xf32> to vector<8x1xf32>
    %cst_61 = arith.constant 3.125000e-02 : f32
    %157 = vector.broadcast %cst_61 : f32 to vector<8x1xf32>
    %158 = arith.mulf %153, %157 : vector<8x1xf32>
    %cst_62 = arith.constant 3.125000e-02 : f32
    %159 = vector.broadcast %cst_62 : f32 to vector<8x1xf32>
    %160 = arith.mulf %156, %159 : vector<8x1xf32>
    %161 = arith.mulf %158, %158 : vector<8x1xf32>
    %162 = arith.subf %160, %161 : vector<8x1xf32>
    %163 = vector.broadcast %158 : vector<8x1xf32> to vector<8x32xf32>
    %164 = arith.subf %149, %163 : vector<8x32xf32>
    %cst_63 = arith.constant 9.99999974E-6 : f32
    %165 = vector.broadcast %cst_63 : f32 to vector<8x1xf32>
    %166 = arith.addf %162, %165 : vector<8x1xf32>
    %167 = math.rsqrt %166 : vector<8x1xf32>
    %168 = vector.broadcast %167 : vector<8x1xf32> to vector<8x32xf32>
    %169 = arith.mulf %164, %168 : vector<8x32xf32>
    %170 = vector.broadcast %150 : vector<1x32xf32> to vector<8x32xf32>
    %171 = arith.mulf %169, %170 : vector<8x32xf32>
    %172 = vector.broadcast %151 : vector<1x32xf32> to vector<8x32xf32>
    %173 = arith.addf %171, %172 : vector<8x32xf32>
    %174 = arith.mulf %173, %173 : vector<8x32xf32>
    %cst_64 = arith.constant dense<0.000000e+00> : vector<8xf32>
    %175 = vector.multi_reduction <add>, %174, %cst_64 [1] : vector<8x32xf32> to vector<8xf32>
    %176 = vector.shape_cast %175 : vector<8xf32> to vector<8x1xf32>
    %cst_65 = arith.constant 1.000000e-24 : f32
    %177 = vector.broadcast %cst_65 : f32 to vector<8x1xf32>
    %178 = arith.maximumf %176, %177 : vector<8x1xf32>
    %179 = math.rsqrt %178 : vector<8x1xf32>
    %180 = vector.broadcast %179 : vector<8x1xf32> to vector<8x32xf32>
    %181 = arith.mulf %173, %180 : vector<8x32xf32>
    %c0_66 = arith.constant 0 : index
    %c0_67 = arith.constant 0 : index
    %182 = vector.load %arg5[%c0_66, %c0_67] : memref<8x32xf32, #tpu.memory_space<vmem>>, vector<8x32xf32>
    tpu.vector_store %arg5[%c0_66, %c0_67], %181 {strides = array<i32>} : memref<8x32xf32, #tpu.memory_space<vmem>>, vector<8x32xf32>,
    return
  }
  func.func @transform_0(%arg0: i32) -> (i32, i32) {
    %c0_i32 = arith.constant 0 : i32
    %c0_i32_0 = arith.constant 0 : i32
    return %arg0, %c0_i32 : i32, i32
  }
  func.func @transform_1(%arg0: i32) -> (i32, i32) {
    %c0_i32 = arith.constant 0 : i32
    %c0_i32_0 = arith.constant 0 : i32
    %c0_i32_1 = arith.constant 0 : i32
    return %c0_i32, %c0_i32_0 : i32, i32
  }
  func.func @transform_2(%arg0: i32) -> (i32, i32) {
    %c0_i32 = arith.constant 0 : i32
    %c0_i32_0 = arith.constant 0 : i32
    %c0_i32_1 = arith.constant 0 : i32
    return %c0_i32, %c0_i32_0 : i32, i32
  }
  func.func @transform_3(%arg0: i32) -> (i32, i32) {
    %c0_i32 = arith.constant 0 : i32
    %c0_i32_0 = arith.constant 0 : i32
    %c0_i32_1 = arith.constant 0 : i32
    return %c0_i32, %c0_i32_0 : i32, i32
  }
  func.func @transform_4(%arg0: i32) -> (i32, i32) {
    %c0_i32 = arith.constant 0 : i32
    %c0_i32_0 = arith.constant 0 : i32
    return %arg0, %c0_i32 : i32, i32
  }
}

</mosaic_0001>

<llo_original>
// kernel: tpu_custom_call.1
$region0: #{tpu_custom_call.1}
  #allocation0 [shape = 'u32[]', space=smem, size = 0x4, offset = 0x4, fixed_abs, tag = 'smem constant byte address 0x4 - core index']
  #allocation1 [shape = 'u32[144,128]{1,0:T(1,128)}', space=vmem, size = 0x12000, scoped, tag = 'internal scratch']
  %s0 = inlined_call_operand.vmem [shape: bf16[8,112], index: 0, kind: input, shape index: {}]
  %s1 = inlined_call_operand.vmem [shape: bf16[816,64], index: 1, kind: input, shape index: {}]
  %s2 = inlined_call_operand.vmem [shape: bf16[128,256], index: 2, kind: input, shape index: {}]
  %s3 = inlined_call_operand.vmem [shape: f32[24,256], index: 3, kind: input, shape index: {}]
  %s4 = inlined_call_operand.hbm [shape: f32[8,32], index: 4, kind: output, shape index: {}]
  %s5 = sld [smem:[#allocation0]]
  $region26: #{tpu_custom_call.1} parent=0
    _
  %s7 = ssub.s32 1, %s5
  %s8 = scalar_select 0, %s7, %s5
  $region1: #{tpu_custom_call.1} parent=0
    #allocation2 [shape = 'u8[4096]{0}', space=vmem, size = 0x1000, scoped, tag = 'output window, operand 0, single buffered']
    #allocation3 [shape = 's32[1]{0}', space=sflag, size = 0x4, scoped, tag = 'scoped memory for tpu_custom_call.1']
    %9 = vsyncpa [#allocation3], 0
    // Predicated region
    $region2: #{tpu_custom_call.1} parent=1 // pred_check
      _
    $region3: #{tpu_custom_call.1} parent=1 // pred_check_branch
      %11 = sbr.rel (0) target = $region5
    $region4: #{tpu_custom_call.1} parent=1 // pred_region
      _
    $region5: #{tpu_custom_call.1} parent=1 // pred_fallthru
      _
    // Predicated region
    $region6: #{tpu_custom_call.1} parent=1 // pred_check
      _
    $region7: #{tpu_custom_call.1} parent=1 // pred_check_branch
      %13 = sbr.rel (0) target = $region9
    $region8: #{tpu_custom_call.1} parent=1 // pred_region
      _
    $region9: #{tpu_custom_call.1} parent=1 // pred_fallthru
      _
    // Predicated region
    $region10: #{tpu_custom_call.1} parent=1 // pred_check
      _
    $region11: #{tpu_custom_call.1} parent=1 // pred_check_branch
      %15 = sbr.rel (0) target = $region13
    $region12: #{tpu_custom_call.1} parent=1 // pred_region
      _
    $region13: #{tpu_custom_call.1} parent=1 // pred_fallthru
      _
    // Predicated region
    $region14: #{tpu_custom_call.1} parent=1 // pred_check
      _
    $region15: #{tpu_custom_call.1} parent=1 // pred_check_branch
      %17 = sbr.rel (0) target = $region17
    $region16: #{tpu_custom_call.1} parent=1 // pred_region
      _
    $region17: #{tpu_custom_call.1} parent=1 // pred_fallthru
      _
    %v19 = vld [vmem:[%s0] sm:$0xf]
    %v20 = vld [vmem:[%s1] sm:$0xf]
    %v21 = vld [vmem:[%s1 + $0x4] sm:$0xf]
    %v22 = vld [vmem:[%s1 + $0x8] sm:$0xf]
    %v23 = vld [vmem:[%s1 + $0xc] sm:$0xf]
    %v24 = vld [vmem:[%s1 + $0x10] sm:$0xf]
    %v25 = vld [vmem:[%s1 + $0x14] sm:$0xf]
    %v26 = vld [vmem:[%s1 + $0x18] sm:$0xf]
    %v27 = vld [vmem:[%s1 + $0x1c] sm:$0xf]
    %v28 = vld [vmem:[%s1 + $0x20] sm:$0xf]
    %v29 = vld [vmem:[%s1 + $0x24] sm:$0xf]
    %v30 = vld [vmem:[%s1 + $0x28] sm:$0xf]
    %v31 = vld [vmem:[%s1 + $0x2c] sm:$0xf]
    %v32 = vld [vmem:[%s1 + $0x30] sm:$0xf]
    %v33 = vld [vmem:[%s1 + $0x34] sm:$0xf]
    %v34 = vld [vmem:[%s3] ss:$0 sm:$0xff]
    %v49 = vunpack.c.l.b16 %v20
    %v50 = vunpack.c.l.b16 %v21
    %v51 = vunpack.c.l.b16 %v22
    %v52 = vunpack.c.l.b16 %v23
    %v53 = vunpack.c.l.b16 %v24
    %v54 = vunpack.c.l.b16 %v25
    %v55 = vunpack.c.l.b16 %v26
    %v56 = vunpack.c.l.b16 %v27
    %v57 = vunpack.c.l.b16 %v28
    %v58 = vunpack.c.l.b16 %v29
    %v59 = vunpack.c.l.b16 %v30
    %v60 = vunpack.c.l.b16 %v31
    %v61 = vunpack.c.l.b16 %v32
    %v62 = vunpack.c.l.b16 %v33
    %v63 = vpack.c.b16 %v50, %v49
    %v64 = vpack.c.b16 %v52, %v51
    %v65 = vpack.c.b16 %v54, %v53
    %v66 = vpack.c.b16 %v56, %v55
    %v67 = vpack.c.b16 %v58, %v57
    %v68 = vpack.c.b16 %v60, %v59
    %v69 = vpack.c.b16 %v62, %v61
    %vm77 = vcmask 916480
    %v79 = vsel %vm77, %v19, 0
    %81 = vmatprep.subr.bf16.mxu0 0
    %82 = vmatpush1.bf16.msra.mxu0 0
    %83 = vmatprep.subr.bf16.mxu0 0
    %84 = vmatpush1.bf16.msra.mxu0 %v69
    %85 = vmatprep.subr.bf16.mxu0 0
    %86 = vmatpush1.bf16.msra.mxu0 %v68
    %87 = vmatprep.subr.bf16.mxu0 0
    %88 = vmatpush1.bf16.msra.mxu0 %v67
    %89 = vmatprep.subr.bf16.mxu0 0
    %90 = vmatpush1.bf16.msra.mxu0 %v66
    %91 = vmatprep.subr.bf16.mxu0 0
    %92 = vmatpush1.bf16.msra.mxu0 %v65
    %93 = vmatprep.subr.bf16.mxu0 0
    %94 = vmatpush1.bf16.msra.mxu0 %v64
    %95 = vmatprep.subr.bf16.mxu0 0
    %96 = vmatpush1.bf16.msra.mxu0 %v63
    %97 = vmatprep.subr.bf16.mxu0 0
    %98 = vmatpush2.bf16.msra.mxu0 0
    %99 = vmatprep.subr.bf16.mxu0 0
    %100 = vmatpush2.bf16.msra.mxu0 0
    %101 = vmatprep.subr.bf16.mxu0 0
    %102 = vmatpush2.bf16.msra.mxu0 0
    %103 = vmatprep.subr.bf16.mxu0 0
    %104 = vmatpush2.bf16.msra.mxu0 0
    %105 = vmatprep.subr.bf16.mxu0 0
    %106 = vmatpush2.bf16.msra.mxu0 0
    %107 = vmatprep.subr.bf16.mxu0 0
    %108 = vmatpush2.bf16.msra.mxu0 0
    %109 = vmatprep.subr.bf16.mxu0 0
    %110 = vmatpush2.bf16.msra.mxu0 0
    %111 = vmatprep.subr.bf16.mxu0 0
    %112 = vmatpush2.bf16.msra.mxu0 0
    %113 = vmatprep.mubr.bf16.mxu0 0
    %114 = vmatmul.mubr.bf16.gmra.mxu0 %v79
    %v115 = vpop.f32.mrf.mxu0
    %v116 = vadd.f32 %v34, %v115
    %v117 = vpop.f32.mrf.mxu0
    %v118 = vpop.f32.mrf.mxu0
    %v119 = vpop.f32.mrf.mxu0
    %120 = vdwg.mxu0
    %v121 = vld [vmem:[%s1 + $0x38] sm:$0xf]
    %v122 = vld [vmem:[%s1 + $0x3c] sm:$0xf]
    %v123 = vld [vmem:[%s1 + $0x40] sm:$0xf]
    %v124 = vld [vmem:[%s1 + $0x44] sm:$0xf]
    %v125 = vld [vmem:[%s1 + $0x48] sm:$0xf]
    %v126 = vld [vmem:[%s1 + $0x4c] sm:$0xf]
    %v127 = vld [vmem:[%s1 + $0x50] sm:$0xf]
    %v128 = vld [vmem:[%s1 + $0x54] sm:$0xf]
    %v129 = vpack.c.bf16 %v116, %v116
    %v130 = vld [vmem:[%s3 + $0x1] ss:$0 sm:$0xff]
    %v139 = vunpack.c.l.b16 %v121
    %v140 = vunpack.c.l.b16 %v122
    %v141 = vunpack.c.l.b16 %v123
    %v142 = vunpack.c.l.b16 %v124
    %v143 = vunpack.c.l.b16 %v125
    %v144 = vunpack.c.l.b16 %v126
    %v145 = vunpack.c.l.b16 %v127
    %v146 = vunpack.c.l.b16 %v128
    %v147 = vpack.c.b16 %v140, %v139
    %v148 = vpack.c.b16 %v142, %v141
    %v149 = vpack.c.b16 %v144, %v143
    %v150 = vpack.c.b16 %v146, %v145
    %vm155 = vcmask 523264
    %v157 = vsel %vm155, %v129, 0
    %159 = vmatprep.subr.bf16.mxu0 0
    %160 = vmatpush1.bf16.msra.mxu0 0
    %161 = vmatprep.subr.bf16.mxu0 0
    %162 = vmatpush1.bf16.msra.mxu0 0
    %163 = vmatprep.subr.bf16.mxu0 0
    %164 = vmatpush1.bf16.msra.mxu0 0
    %165 = vmatprep.subr.bf16.mxu0 0
    %166 = vmatpush1.bf16.msra.mxu0 0
    %167 = vmatprep.subr.bf16.mxu0 0
    %168 = vmatpush1.bf16.msra.mxu0 %v150
    %169 = vmatprep.subr.bf16.mxu0 0
    %170 = vmatpush1.bf16.msra.mxu0 %v149
    %171 = vmatprep.subr.bf16.mxu0 0
    %172 = vmatpush1.bf16.msra.mxu0 %v148
    %173 = vmatprep.subr.bf16.mxu0 0
    %174 = vmatpush1.bf16.msra.mxu0 %v147
    %175 = vmatprep.subr.bf16.mxu0 0
    %176 = vmatpush2.bf16.msra.mxu0 0
    %177 = vmatprep.subr.bf16.mxu0 0
    %178 = vmatpush2.bf16.msra.mxu0 0
    %179 = vmatprep.subr.bf16.mxu0 0
    %180 = vmatpush2.bf16.msra.mxu0 0
    %181 = vmatprep.subr.bf16.mxu0 0
    %182 = vmatpush2.bf16.msra.mxu0 0
    %183 = vmatprep.subr.bf16.mxu0 0
    %184 = vmatpush2.bf16.msra.mxu0 0
    %185 = vmatprep.subr.bf16.mxu0 0
    %186 = vmatpush2.bf16.msra.mxu0 0
    %187 = vmatprep.subr.bf16.mxu0 0
    %188 = vmatpush2.bf16.msra.mxu0 0
    %189 = vmatprep.subr.bf16.mxu0 0
    %190 = vmatpush2.bf16.msra.mxu0 0
    %191 = vmatprep.mubr.bf16.mxu0 0
    %192 = vmatmul.mubr.bf16.gmra.mxu0 %v157
    %v193 = vpop.f32.mrf.mxu0
    %v194 = vadd.f32 %v130, %v193
    %v195 = vpop.f32.mrf.mxu0
    %v196 = vpop.f32.mrf.mxu0
    %v197 = vpop.f32.mrf.mxu0
    %198 = vdwg.mxu0
    %v199 = vld [vmem:[%s3 + $0x4] ss:$0 sm:$0xff]
    %v200 = vld [vmem:[%s3 + $0x5] ss:$0 sm:$0xff]
    %v201 = vsel %vm155, %v194, 0.0
    %202 = vadd.xlane.f32.xlu0 %v201
    %v203 = vpop.xlane.xlu0 %202
    %v204 = vmul.f32 %v194, %v194
    %v205 = vsel %vm155, %v204, 0.0
    %206 = vadd.xlane.f32.xlu0 %v205
    %v207 = vpop.xlane.xlu0 %206
    %v208 = vmul.f32 %v203, 0.015625
    %v209 = vmul.f32 %v207, 0.015625
    %v210 = vmul.f32 %v208, %v208
    %v211 = vsub.f32 %v209, %v210
    %v212 = vsub.f32 %v194, %v208
    %v213 = vadd.f32 %v211, 1e-05
    %v214 = vrsqrt.pop %v213
    %v215 = vmul.f32 %v212, %v214
    %v216 = vmul.f32 %v215, %v199
    %v217 = vadd.f32 %v216, %v200
    %v218 = vld [vmem:[%s2] sm:$0xff]
    %v219 = vld [vmem:[%s2 + $0x8] sm:$0xff]
    %v220 = vld [vmem:[%s2 + $0x10] sm:$0xff]
    %v221 = vld [vmem:[%s2 + $0x18] sm:$0xff]
    %v222 = vld [vmem:[%s2 + $0x20] sm:$0xff]
    %v223 = vld [vmem:[%s2 + $0x28] sm:$0xff]
    %v224 = vld [vmem:[%s2 + $0x30] sm:$0xff]
    %v225 = vld [vmem:[%s2 + $0x38] sm:$0xff]
    %v226 = vpack.c.bf16 %v217, %v217
    %s227 = scalar_lea.vmem %s3, 2
    %v228 = vld [vmem:[%s227] ss:$8 sm:$0x3]
    %v230 = vlaneseq
    %v231 = vshrl.u32 %v230, 7
    %v232 = vsub.s32 0, %v231
    %v233 = vrot.slane %v228, %v232
    %v234 = vlaneseq
    %v235 = vshrl.u32 %v234, 7
    %v236 = vsub.s32 1, %v235
    %v237 = vrot.slane %v228, %v236
    %v248 = vunpack.c.l.b16 %v218
    %v249 = vunpack.c.h.b16 %v218
    %v250 = vunpack.c.l.b16 %v219
    %v251 = vunpack.c.h.b16 %v219
    %v252 = vunpack.c.l.b16 %v220
    %v253 = vunpack.c.h.b16 %v220
    %v254 = vunpack.c.l.b16 %v221
    %v255 = vunpack.c.h.b16 %v221
    %v256 = vunpack.c.l.b16 %v222
    %v257 = vunpack.c.h.b16 %v222
    %v258 = vunpack.c.l.b16 %v223
    %v259 = vunpack.c.h.b16 %v223
    %v260 = vunpack.c.l.b16 %v224
    %v261 = vunpack.c.h.b16 %v224
    %v262 = vunpack.c.l.b16 %v225
    %v263 = vunpack.c.h.b16 %v225
    %v264 = vpack.c.b16 %v250, %v248
    %v265 = vpack.c.b16 %v251, %v249
    %v266 = vpack.c.b16 %v254, %v252
    %v267 = vpack.c.b16 %v255, %v253
    %v268 = vpack.c.b16 %v258, %v256
    %v269 = vpack.c.b16 %v259, %v257
    %v270 = vpack.c.b16 %v262, %v260
    %v271 = vpack.c.b16 %v263, %v261
    %v281 = vsel %vm155, %v226, 0
    %283 = vmatprep.subr.bf16.mxu0 0
    %284 = vmatpush1.bf16.msra.mxu0 0
    %285 = vmatprep.subr.bf16.mxu0 0
    %286 = vmatpush1.bf16.msra.mxu0 0
    %287 = vmatprep.subr.bf16.mxu0 0
    %288 = vmatpush1.bf16.msra.mxu0 0
    %289 = vmatprep.subr.bf16.mxu0 0
    %290 = vmatpush1.bf16.msra.mxu0 0
    %291 = vmatprep.subr.bf16.mxu0 %v271
    %292 = vmatpush1.bf16.msra.mxu0 %v270
    %293 = vmatprep.subr.bf16.mxu0 %v269
    %294 = vmatpush1.bf16.msra.mxu0 %v268
    %295 = vmatprep.subr.bf16.mxu0 %v267
    %296 = vmatpush1.bf16.msra.mxu0 %v266
    %297 = vmatprep.subr.bf16.mxu0 %v265
    %298 = vmatpush1.bf16.msra.mxu0 %v264
    %299 = vmatprep.subr.bf16.mxu0 0
    %300 = vmatpush2.bf16.msra.mxu0 0
    %301 = vmatprep.subr.bf16.mxu0 0
    %302 = vmatpush2.bf16.msra.mxu0 0
    %303 = vmatprep.subr.bf16.mxu0 0
    %304 = vmatpush2.bf16.msra.mxu0 0
    %305 = vmatprep.subr.bf16.mxu0 0
    %306 = vmatpush2.bf16.msra.mxu0 0
    %307 = vmatprep.subr.bf16.mxu0 0
    %308 = vmatpush2.bf16.msra.mxu0 0
    %309 = vmatprep.subr.bf16.mxu0 0
    %310 = vmatpush2.bf16.msra.mxu0 0
    %311 = vmatprep.subr.bf16.mxu0 0
    %312 = vmatpush2.bf16.msra.mxu0 0
    %313 = vmatprep.subr.bf16.mxu0 0
    %314 = vmatpush2.bf16.msra.mxu0 0
    %315 = vmatprep.mubr.bf16.mxu0 0
    %316 = vmatmul.mubr.bf16.gmra.mxu0 %v281
    %v317 = vpop.f32.mrf.mxu0
    %v318 = vadd.f32 %v233, %v317
    %v319 = vpop.f32.mrf.mxu0
    %v320 = vadd.f32 %v237, %v319
    %v321 = vpop.f32.mrf.mxu0
    %v322 = vpop.f32.mrf.mxu0
    %323 = vdwg.mxu0
    %v324 = vmax.f32 %v318, 0.0
    %v325 = vmax.f32 %v320, 0.0
    %v326 = vld [vmem:[%s1 + $0x58] sm:$0xf]
    %v327 = vld [vmem:[%s1 + $0x5c] sm:$0xf]
    %v328 = vld [vmem:[%s1 + $0x60] sm:$0xf]
    %v329 = vld [vmem:[%s1 + $0x64] sm:$0xf]
    %v330 = vld [vmem:[%s1 + $0x68] sm:$0xf]
    %v331 = vld [vmem:[%s1 + $0x6c] sm:$0xf]
    %v332 = vld [vmem:[%s1 + $0x70] sm:$0xf]
    %v333 = vld [vmem:[%s1 + $0x74] sm:$0xf]
    %v334 = vld [vmem:[%s1 + $0x78] sm:$0xf]
    %v335 = vld [vmem:[%s1 + $0x7c] sm:$0xf]
    %v336 = vld [vmem:[%s1 + $0x80] sm:$0xf]
    %v337 = vld [vmem:[%s1 + $0x84] sm:$0xf]
    %v338 = vld [vmem:[%s1 + $0x88] sm:$0xf]
    %v339 = vld [vmem:[%s1 + $0x8c] sm:$0xf]
    %v340 = vld [vmem:[%s1 + $0x90] sm:$0xf]
    %v341 = vld [vmem:[%s1 + $0x94] sm:$0xf]
    %v342 = vld [vmem:[%s1 + $0x98] sm:$0xf]
    %v343 = vld [vmem:[%s1 + $0x9c] sm:$0xf]
    %v344 = vld [vmem:[%s1 + $0xa0] sm:$0xf]
    %v345 = vld [vmem:[%s1 + $0xa4] sm:$0xf]
    %v346 = vld [vmem:[%s1 + $0xa8] sm:$0xf]
    %v347 = vld [vmem:[%s1 + $0xac] sm:$0xf]
    %v348 = vld [vmem:[%s1 + $0xb0] sm:$0xf]
    %v349 = vld [vmem:[%s1 + $0xb4] sm:$0xf]
    %v350 = vld [vmem:[%s1 + $0xb8] sm:$0xf]
    %v351 = vld [vmem:[%s1 + $0xbc] sm:$0xf]
    %v352 = vld [vmem:[%s1 + $0xc0] sm:$0xf]
    %v353 = vld [vmem:[%s1 + $0xc4] sm:$0xf]
    %v354 = vld [vmem:[%s1 + $0xc8] sm:$0xf]
    %v355 = vld [vmem:[%s1 + $0xcc] sm:$0xf]
    %v356 = vld [vmem:[%s1 + $0xd0] sm:$0xf]
    %v357 = vld [vmem:[%s1 + $0xd4] sm:$0xf]
    %v358 = vpack.c.bf16 %v324, %v324
    %v359 = vpack.c.bf16 %v325, %v325
    %v360 = vld [vmem:[%s3 + $0x3] ss:$0 sm:$0xff]
    %v393 = vunpack.c.l.b16 %v326
    %v394 = vunpack.c.l.b16 %v327
    %v395 = vunpack.c.l.b16 %v328
    %v396 = vunpack.c.l.b16 %v329
    %v397 = vunpack.c.l.b16 %v330
    %v398 = vunpack.c.l.b16 %v331
    %v399 = vunpack.c.l.b16 %v332
    %v400 = vunpack.c.l.b16 %v333
    %v401 = vunpack.c.l.b16 %v334
    %v402 = vunpack.c.l.b16 %v335
    %v403 = vunpack.c.l.b16 %v336
    %v404 = vunpack.c.l.b16 %v337
    %v405 = vunpack.c.l.b16 %v338
    %v406 = vunpack.c.l.b16 %v339
    %v407 = vunpack.c.l.b16 %v340
    %v408 = vunpack.c.l.b16 %v341
    %v409 = vunpack.c.l.b16 %v342
    %v410 = vunpack.c.l.b16 %v343
    %v411 = vunpack.c.l.b16 %v344
    %v412 = vunpack.c.l.b16 %v345
    %v413 = vunpack.c.l.b16 %v346
    %v414 = vunpack.c.l.b16 %v347
    %v415 = vunpack.c.l.b16 %v348
    %v416 = vunpack.c.l.b16 %v349
    %v417 = vunpack.c.l.b16 %v350
    %v418 = vunpack.c.l.b16 %v351
    %v419 = vunpack.c.l.b16 %v352
    %v420 = vunpack.c.l.b16 %v353
    %v421 = vunpack.c.l.b16 %v354
    %v422 = vunpack.c.l.b16 %v355
    %v423 = vunpack.c.l.b16 %v356
    %v424 = vunpack.c.l.b16 %v357
    %v425 = vpack.c.b16 %v394, %v393
    %v426 = vpack.c.b16 %v396, %v395
    %v427 = vpack.c.b16 %v398, %v397
    %v428 = vpack.c.b16 %v400, %v399
    %v429 = vpack.c.b16 %v402, %v401
    %v430 = vpack.c.b16 %v404, %v403
    %v431 = vpack.c.b16 %v406, %v405
    %v432 = vpack.c.b16 %v408, %v407
    %v433 = vpack.c.b16 %v410, %v409
    %v434 = vpack.c.b16 %v412, %v411
    %v435 = vpack.c.b16 %v414, %v413
    %v436 = vpack.c.b16 %v416, %v415
    %v437 = vpack.c.b16 %v418, %v417
    %v438 = vpack.c.b16 %v420, %v419
    %v439 = vpack.c.b16 %v422, %v421
    %v440 = vpack.c.b16 %v424, %v423
    %457 = vmatprep.subr.bf16.mxu0 0
    %458 = vmatpush1.bf16.msra.mxu0 %v432
    %459 = vmatprep.subr.bf16.mxu0 0
    %460 = vmatpush1.bf16.msra.mxu0 %v431
    %461 = vmatprep.subr.bf16.mxu0 0
    %462 = vmatpush1.bf16.msra.mxu0 %v430
    %463 = vmatprep.subr.bf16.mxu0 0
    %464 = vmatpush1.bf16.msra.mxu0 %v429
    %465 = vmatprep.subr.bf16.mxu0 0
    %466 = vmatpush1.bf16.msra.mxu0 %v428
    %467 = vmatprep.subr.bf16.mxu0 0
    %468 = vmatpush1.bf16.msra.mxu0 %v427
    %469 = vmatprep.subr.bf16.mxu0 0
    %470 = vmatpush1.bf16.msra.mxu0 %v426
    %471 = vmatprep.subr.bf16.mxu0 0
    %472 = vmatpush1.bf16.msra.mxu0 %v425
    %473 = vmatprep.subr.bf16.mxu0 0
    %474 = vmatpush2.bf16.msra.mxu0 %v440
    %475 = vmatprep.subr.bf16.mxu0 0
    %476 = vmatpush2.bf16.msra.mxu0 %v439
    %477 = vmatprep.subr.bf16.mxu0 0
    %478 = vmatpush2.bf16.msra.mxu0 %v438
    %479 = vmatprep.subr.bf16.mxu0 0
    %480 = vmatpush2.bf16.msra.mxu0 %v437
    %481 = vmatprep.subr.bf16.mxu0 0
    %482 = vmatpush2.bf16.msra.mxu0 %v436
    %483 = vmatprep.subr.bf16.mxu0 0
    %484 = vmatpush2.bf16.msra.mxu0 %v435
    %485 = vmatprep.subr.bf16.mxu0 0
    %486 = vmatpush2.bf16.msra.mxu0 %v434
    %487 = vmatprep.subr.bf16.mxu0 0
    %488 = vmatpush2.bf16.msra.mxu0 %v433
    %489 = vmatprep.mubr.bf16.mxu0 %v359
    %490 = vmatmul.mubr.bf16.gmra.mxu0 %v358
    %v491 = vpop.f32.mrf.mxu0
    %v492 = vadd.f32 %v360, %v491
    %v493 = vpop.f32.mrf.mxu0
    %v494 = vpop.f32.mrf.mxu0
    %v495 = vpop.f32.mrf.mxu0
    %496 = vdwg.mxu0
    %v497 = vadd.f32 %v217, %v492
    %v498 = vld [vmem:[%s3 + $0x6] ss:$0 sm:$0xff]
    %v499 = vld [vmem:[%s3 + $0x7] ss:$0 sm:$0xff]
    %v500 = vsel %vm155, %v497, 0.0
    %501 = vadd.xlane.f32.xlu0 %v500
    %v502 = vpop.xlane.xlu0 %501
    %v503 = vmul.f32 %v497, %v497
    %v504 = vsel %vm155, %v503, 0.0
    %505 = vadd.xlane.f32.xlu0 %v504
    %v506 = vpop.xlane.xlu0 %505
    %v507 = vmul.f32 %v502, 0.015625
    %v508 = vmul.f32 %v506, 0.015625
    %v509 = vmul.f32 %v507, %v507
    %v510 = vsub.f32 %v508, %v509
    %v511 = vsub.f32 %v497, %v507
    %v512 = vadd.f32 %v510, 1e-05
    %v513 = vrsqrt.pop %v512
    %v514 = vmul.f32 %v511, %v513
    %v515 = vmul.f32 %v514, %v498
    %v516 = vadd.f32 %v515, %v499
    %v517 = vld [vmem:[%s1 + $0xd8] sm:$0xf]
    %v518 = vld [vmem:[%s1 + $0xdc] sm:$0xf]
    %v519 = vld [vmem:[%s1 + $0xe0] sm:$0xf]
    %v520 = vld [vmem:[%s1 + $0xe4] sm:$0xf]
    %v521 = vld [vmem:[%s1 + $0xe8] sm:$0xf]
    %v522 = vld [vmem:[%s1 + $0xec] sm:$0xf]
    %v523 = vld [vmem:[%s1 + $0xf0] sm:$0xf]
    %v524 = vld [vmem:[%s1 + $0xf4] sm:$0xf]
    %v525 = vpack.c.bf16 %v516, %v516
    %v526 = vld [vmem:[%s3 + $0x10] ss:$0 sm:$0xff]
    %v535 = vunpack.c.l.b16 %v517
    %v536 = vunpack.c.l.b16 %v518
    %v537 = vunpack.c.l.b16 %v519
    %v538 = vunpack.c.l.b16 %v520
    %v539 = vunpack.c.l.b16 %v521
    %v540 = vunpack.c.l.b16 %v522
    %v541 = vunpack.c.l.b16 %v523
    %v542 = vunpack.c.l.b16 %v524
    %v543 = vpack.c.b16 %v536, %v535
    %v544 = vpack.c.b16 %v538, %v537
    %v545 = vpack.c.b16 %v540, %v539
    %v546 = vpack.c.b16 %v542, %v541
    %v552 = vsel %vm155, %v525, 0
    %554 = vmatprep.subr.bf16.mxu0 0
    %555 = vmatpush1.bf16.msra.mxu0 0
    %556 = vmatprep.subr.bf16.mxu0 0
    %557 = vmatpush1.bf16.msra.mxu0 0
    %558 = vmatprep.subr.bf16.mxu0 0
    %559 = vmatpush1.bf16.msra.mxu0 0
    %560 = vmatprep.subr.bf16.mxu0 0
    %561 = vmatpush1.bf16.msra.mxu0 0
    %562 = vmatprep.subr.bf16.mxu0 0
    %563 = vmatpush1.bf16.msra.mxu0 %v546
    %564 = vmatprep.subr.bf16.mxu0 0
    %565 = vmatpush1.bf16.msra.mxu0 %v545
    %566 = vmatprep.subr.bf16.mxu0 0
    %567 = vmatpush1.bf16.msra.mxu0 %v544
    %568 = vmatprep.subr.bf16.mxu0 0
    %569 = vmatpush1.bf16.msra.mxu0 %v543
    %570 = vmatprep.subr.bf16.mxu0 0
    %571 = vmatpush2.bf16.msra.mxu0 0
    %572 = vmatprep.subr.bf16.mxu0 0
    %573 = vmatpush2.bf16.msra.mxu0 0
    %574 = vmatprep.subr.bf16.mxu0 0
    %575 = vmatpush2.bf16.msra.mxu0 0
    %576 = vmatprep.subr.bf16.mxu0 0
    %577 = vmatpush2.bf16.msra.mxu0 0
    %578 = vmatprep.subr.bf16.mxu0 0
    %579 = vmatpush2.bf16.msra.mxu0 0
    %580 = vmatprep.subr.bf16.mxu0 0
    %581 = vmatpush2.bf16.msra.mxu0 0
    %582 = vmatprep.subr.bf16.mxu0 0
    %583 = vmatpush2.bf16.msra.mxu0 0
    %584 = vmatprep.subr.bf16.mxu0 0
    %585 = vmatpush2.bf16.msra.mxu0 0
    %586 = vmatprep.mubr.bf16.mxu0 0
    %587 = vmatmul.mubr.bf16.gmra.mxu0 %v552
    %v588 = vpop.f32.mrf.mxu0
    %v589 = vadd.f32 %v526, %v588
    %v590 = vpop.f32.mrf.mxu0
    %v591 = vpop.f32.mrf.mxu0
    %v592 = vpop.f32.mrf.mxu0
    %593 = vdwg.mxu0
    %v594 = vld [vmem:[%s3 + $0x13] ss:$0 sm:$0xff]
    %v595 = vld [vmem:[%s3 + $0x14] ss:$0 sm:$0xff]
    %v596 = vsel %vm155, %v589, 0.0
    %597 = vadd.xlane.f32.xlu0 %v596
    %v598 = vpop.xlane.xlu0 %597
    %v599 = vmul.f32 %v589, %v589
    %v600 = vsel %vm155, %v599, 0.0
    %601 = vadd.xlane.f32.xlu0 %v600
    %v602 = vpop.xlane.xlu0 %601
    %v603 = vmul.f32 %v598, 0.015625
    %v604 = vmul.f32 %v602, 0.015625
    %v605 = vmul.f32 %v603, %v603
    %v606 = vsub.f32 %v604, %v605
    %v607 = vsub.f32 %v589, %v603
    %v608 = vadd.f32 %v606, 1e-05
    %v609 = vrsqrt.pop %v608
    %v610 = vmul.f32 %v607, %v609
    %v611 = vmul.f32 %v610, %v594
    %v612 = vadd.f32 %v611, %v595
    %v613 = vld [vmem:[%s2 + $0x40] sm:$0xff]
    %v614 = vld [vmem:[%s2 + $0x48] sm:$0xff]
    %v615 = vld [vmem:[%s2 + $0x50] sm:$0xff]
    %v616 = vld [vmem:[%s2 + $0x58] sm:$0xff]
    %v617 = vld [vmem:[%s2 + $0x60] sm:$0xff]
    %v618 = vld [vmem:[%s2 + $0x68] sm:$0xff]
    %v619 = vld [vmem:[%s2 + $0x70] sm:$0xff]
    %v620 = vld [vmem:[%s2 + $0x78] sm:$0xff]
    %v621 = vpack.c.bf16 %v612, %v612
    %s622 = scalar_lea.vmem %s3, 17
    %v623 = vld [vmem:[%s622] ss:$8 sm:$0x3]
    %v625 = vlaneseq
    %v626 = vshrl.u32 %v625, 7
    %v627 = vsub.s32 0, %v626
    %v628 = vrot.slane %v623, %v627
    %v629 = vlaneseq
    %v630 = vshrl.u32 %v629, 7
    %v631 = vsub.s32 1, %v630
    %v632 = vrot.slane %v623, %v631
    %v643 = vunpack.c.l.b16 %v613
    %v644 = vunpack.c.h.b16 %v613
    %v645 = vunpack.c.l.b16 %v614
    %v646 = vunpack.c.h.b16 %v614
    %v647 = vunpack.c.l.b16 %v615
    %v648 = vunpack.c.h.b16 %v615
    %v649 = vunpack.c.l.b16 %v616
    %v650 = vunpack.c.h.b16 %v616
    %v651 = vunpack.c.l.b16 %v617
    %v652 = vunpack.c.h.b16 %v617
    %v653 = vunpack.c.l.b16 %v618
    %v654 = vunpack.c.h.b16 %v618
    %v655 = vunpack.c.l.b16 %v619
    %v656 = vunpack.c.h.b16 %v619
    %v657 = vunpack.c.l.b16 %v620
    %v658 = vunpack.c.h.b16 %v620
    %v659 = vpack.c.b16 %v645, %v643
    %v660 = vpack.c.b16 %v646, %v644
    %v661 = vpack.c.b16 %v649, %v647
    %v662 = vpack.c.b16 %v650, %v648
    %v663 = vpack.c.b16 %v653, %v651
    %v664 = vpack.c.b16 %v654, %v652
    %v665 = vpack.c.b16 %v657, %v655
    %v666 = vpack.c.b16 %v658, %v656
    %v676 = vsel %vm155, %v621, 0
    %678 = vmatprep.subr.bf16.mxu0 0
    %679 = vmatpush1.bf16.msra.mxu0 0
    %680 = vmatprep.subr.bf16.mxu0 0
    %681 = vmatpush1.bf16.msra.mxu0 0
    %682 = vmatprep.subr.bf16.mxu0 0
    %683 = vmatpush1.bf16.msra.mxu0 0
    %684 = vmatprep.subr.bf16.mxu0 0
    %685 = vmatpush1.bf16.msra.mxu0 0
    %686 = vmatprep.subr.bf16.mxu0 %v666
    %687 = vmatpush1.bf16.msra.mxu0 %v665
    %688 = vmatprep.subr.bf16.mxu0 %v664
    %689 = vmatpush1.bf16.msra.mxu0 %v663
    %690 = vmatprep.subr.bf16.mxu0 %v662
    %691 = vmatpush1.bf16.msra.mxu0 %v661
    %692 = vmatprep.subr.bf16.mxu0 %v660
    %693 = vmatpush1.bf16.msra.mxu0 %v659
    %694 = vmatprep.subr.bf16.mxu0 0
    %695 = vmatpush2.bf16.msra.mxu0 0
    %696 = vmatprep.subr.bf16.mxu0 0
    %697 = vmatpush2.bf16.msra.mxu0 0
    %698 = vmatprep.subr.bf16.mxu0 0
    %699 = vmatpush2.bf16.msra.mxu0 0
    %700 = vmatprep.subr.bf16.mxu0 0
    %701 = vmatpush2.bf16.msra.mxu0 0
    %702 = vmatprep.subr.bf16.mxu0 0
    %703 = vmatpush2.bf16.msra.mxu0 0
    %704 = vmatprep.subr.bf16.mxu0 0
    %705 = vmatpush2.bf16.msra.mxu0 0
    %706 = vmatprep.subr.bf16.mxu0 0
    %707 = vmatpush2.bf16.msra.mxu0 0
    %708 = vmatprep.subr.bf16.mxu0 0
    %709 = vmatpush2.bf16.msra.mxu0 0
    %710 = vmatprep.mubr.bf16.mxu0 0
    %711 = vmatmul.mubr.bf16.gmra.mxu0 %v676
    %v712 = vpop.f32.mrf.mxu0
    %v713 = vadd.f32 %v628, %v712
    %v714 = vpop.f32.mrf.mxu0
    %v715 = vadd.f32 %v632, %v714
    %v716 = vpop.f32.mrf.mxu0
    %v717 = vpop.f32.mrf.mxu0
    %718 = vdwg.mxu0
    %v719 = vmax.f32 %v713, 0.0
    %v720 = vmax.f32 %v715, 0.0
    %v721 = vld [vmem:[%s1 + $0xf8] sm:$0xf]
    %v722 = vld [vmem:[%s1 + $0xfc] sm:$0xf]
    %v723 = vld [vmem:[%s1 + $0x100] sm:$0xf]
    %v724 = vld [vmem:[%s1 + $0x104] sm:$0xf]
    %v725 = vld [vmem:[%s1 + $0x108] sm:$0xf]
    %v726 = vld [vmem:[%s1 + $0x10c] sm:$0xf]
    %v727 = vld [vmem:[%s1 + $0x110] sm:$0xf]
    %v728 = vld [vmem:[%s1 + $0x114] sm:$0xf]
    %v729 = vld [vmem:[%s1 + $0x118] sm:$0xf]
    %v730 = vld [vmem:[%s1 + $0x11c] sm:$0xf]
    %v731 = vld [vmem:[%s1 + $0x120] sm:$0xf]
    %v732 = vld [vmem:[%s1 + $0x124] sm:$0xf]
    %v733 = vld [vmem:[%s1 + $0x128] sm:$0xf]
    %v734 = vld [vmem:[%s1 + $0x12c] sm:$0xf]
    %v735 = vld [vmem:[%s1 + $0x130] sm:$0xf]
    %v736 = vld [vmem:[%s1 + $0x134] sm:$0xf]
    %v737 = vld [vmem:[%s1 + $0x138] sm:$0xf]
    %v738 = vld [vmem:[%s1 + $0x13c] sm:$0xf]
    %v739 = vld [vmem:[%s1 + $0x140] sm:$0xf]
    %v740 = vld [vmem:[%s1 + $0x144] sm:$0xf]
    %v741 = vld [vmem:[%s1 + $0x148] sm:$0xf]
    %v742 = vld [vmem:[%s1 + $0x14c] sm:$0xf]
    %v743 = vld [vmem:[%s1 + $0x150] sm:$0xf]
    %v744 = vld [vmem:[%s1 + $0x154] sm:$0xf]
    %v745 = vld [vmem:[%s1 + $0x158] sm:$0xf]
    %v746 = vld [vmem:[%s1 + $0x15c] sm:$0xf]
    %v747 = vld [vmem:[%s1 + $0x160] sm:$0xf]
    %v748 = vld [vmem:[%s1 + $0x164] sm:$0xf]
    %v749 = vld [vmem:[%s1 + $0x168] sm:$0xf]
    %v750 = vld [vmem:[%s1 + $0x16c] sm:$0xf]
    %v751 = vld [vmem:[%s1 + $0x170] sm:$0xf]
    %v752 = vld [vmem:[%s1 + $0x174] sm:$0xf]
    %v753 = vpack.c.bf16 %v719, %v719
    %v754 = vpack.c.bf16 %v720, %v720
    %v755 = vld [vmem:[%s3 + $0x12] ss:$0 sm:$0xff]
    %v788 = vunpack.c.l.b16 %v721
    %v789 = vunpack.c.l.b16 %v722
    %v790 = vunpack.c.l.b16 %v723
    %v791 = vunpack.c.l.b16 %v724
    %v792 = vunpack.c.l.b16 %v725
    %v793 = vunpack.c.l.b16 %v726
    %v794 = vunpack.c.l.b16 %v727
    %v795 = vunpack.c.l.b16 %v728
    %v796 = vunpack.c.l.b16 %v729
    %v797 = vunpack.c.l.b16 %v730
    %v798 = vunpack.c.l.b16 %v731
    %v799 = vunpack.c.l.b16 %v732
    %v800 = vunpack.c.l.b16 %v733
    %v801 = vunpack.c.l.b16 %v734
    %v802 = vunpack.c.l.b16 %v735
    %v803 = vunpack.c.l.b16 %v736
    %v804 = vunpack.c.l.b16 %v737
    %v805 = vunpack.c.l.b16 %v738
    %v806 = vunpack.c.l.b16 %v739
    %v807 = vunpack.c.l.b16 %v740
    %v808 = vunpack.c.l.b16 %v741
    %v809 = vunpack.c.l.b16 %v742
    %v810 = vunpack.c.l.b16 %v743
    %v811 = vunpack.c.l.b16 %v744
    %v812 = vunpack.c.l.b16 %v745
    %v813 = vunpack.c.l.b16 %v746
    %v814 = vunpack.c.l.b16 %v747
    %v815 = vunpack.c.l.b16 %v748
    %v816 = vunpack.c.l.b16 %v749
    %v817 = vunpack.c.l.b16 %v750
    %v818 = vunpack.c.l.b16 %v751
    %v819 = vunpack.c.l.b16 %v752
    %v820 = vpack.c.b16 %v789, %v788
    %v821 = vpack.c.b16 %v791, %v790
    %v822 = vpack.c.b16 %v793, %v792
    %v823 = vpack.c.b16 %v795, %v794
    %v824 = vpack.c.b16 %v797, %v796
    %v825 = vpack.c.b16 %v799, %v798
    %v826 = vpack.c.b16 %v801, %v800
    %v827 = vpack.c.b16 %v803, %v802
    %v828 = vpack.c.b16 %v805, %v804
    %v829 = vpack.c.b16 %v807, %v806
    %v830 = vpack.c.b16 %v809, %v808
    %v831 = vpack.c.b16 %v811, %v810
    %v832 = vpack.c.b16 %v813, %v812
    %v833 = vpack.c.b16 %v815, %v814
    %v834 = vpack.c.b16 %v817, %v816
    %v835 = vpack.c.b16 %v819, %v818
    %852 = vmatprep.subr.bf16.mxu0 0
    %853 = vmatpush1.bf16.msra.mxu0 %v827
    %854 = vmatprep.subr.bf16.mxu0 0
    %855 = vmatpush1.bf16.msra.mxu0 %v826
    %856 = vmatprep.subr.bf16.mxu0 0
    %857 = vmatpush1.bf16.msra.mxu0 %v825
    %858 = vmatprep.subr.bf16.mxu0 0
    %859 = vmatpush1.bf16.msra.mxu0 %v824
    %860 = vmatprep.subr.bf16.mxu0 0
    %861 = vmatpush1.bf16.msra.mxu0 %v823
    %862 = vmatprep.subr.bf16.mxu0 0
    %863 = vmatpush1.bf16.msra.mxu0 %v822
    %864 = vmatprep.subr.bf16.mxu0 0
    %865 = vmatpush1.bf16.msra.mxu0 %v821
    %866 = vmatprep.subr.bf16.mxu0 0
    %867 = vmatpush1.bf16.msra.mxu0 %v820
    %868 = vmatprep.subr.bf16.mxu0 0
    %869 = vmatpush2.bf16.msra.mxu0 %v835
    %870 = vmatprep.subr.bf16.mxu0 0
    %871 = vmatpush2.bf16.msra.mxu0 %v834
    %872 = vmatprep.subr.bf16.mxu0 0
    %873 = vmatpush2.bf16.msra.mxu0 %v833
    %874 = vmatprep.subr.bf16.mxu0 0
    %875 = vmatpush2.bf16.msra.mxu0 %v832
    %876 = vmatprep.subr.bf16.mxu0 0
    %877 = vmatpush2.bf16.msra.mxu0 %v831
    %878 = vmatprep.subr.bf16.mxu0 0
    %879 = vmatpush2.bf16.msra.mxu0 %v830
    %880 = vmatprep.subr.bf16.mxu0 0
    %881 = vmatpush2.bf16.msra.mxu0 %v829
    %882 = vmatprep.subr.bf16.mxu0 0
    %883 = vmatpush2.bf16.msra.mxu0 %v828
    %884 = vmatprep.mubr.bf16.mxu0 %v754
    %885 = vmatmul.mubr.bf16.gmra.mxu0 %v753
    %v886 = vpop.f32.mrf.mxu0
    %v887 = vadd.f32 %v755, %v886
    %v888 = vpop.f32.mrf.mxu0
    %v889 = vpop.f32.mrf.mxu0
    %v890 = vpop.f32.mrf.mxu0
    %891 = vdwg.mxu0
    %v892 = vadd.f32 %v612, %v887
    %v893 = vld [vmem:[%s3 + $0x15] ss:$0 sm:$0xff]
    %v894 = vld [vmem:[%s3 + $0x16] ss:$0 sm:$0xff]
    %v895 = vsel %vm155, %v892, 0.0
    %896 = vadd.xlane.f32.xlu0 %v895
    %v897 = vpop.xlane.xlu0 %896
    %v898 = vmul.f32 %v892, %v892
    %v899 = vsel %vm155, %v898, 0.0
    %900 = vadd.xlane.f32.xlu0 %v899
    %v901 = vpop.xlane.xlu0 %900
    %v902 = vmul.f32 %v897, 0.015625
    %v903 = vmul.f32 %v901, 0.015625
    %v904 = vmul.f32 %v902, %v902
    %v905 = vsub.f32 %v903, %v904
    %v906 = vsub.f32 %v892, %v902
    %v907 = vadd.f32 %v905, 1e-05
    %v908 = vrsqrt.pop %v907
    %v909 = vmul.f32 %v906, %v908
    %v910 = vmul.f32 %v909, %v893
    %v911 = vadd.f32 %v910, %v894
    %v912 = vld [vmem:[%s1 + $0x178] sm:$0xf]
    %v913 = vld [vmem:[%s1 + $0x17c] sm:$0xf]
    %v914 = vld [vmem:[%s1 + $0x180] sm:$0xf]
    %v915 = vld [vmem:[%s1 + $0x184] sm:$0xf]
    %v916 = vld [vmem:[%s1 + $0x188] sm:$0xf]
    %v917 = vld [vmem:[%s1 + $0x18c] sm:$0xf]
    %v918 = vld [vmem:[%s1 + $0x190] sm:$0xf]
    %v919 = vld [vmem:[%s1 + $0x194] sm:$0xf]
    %v920 = vpack.c.bf16 %v911, %v911
    %v921 = vld [vmem:[%s3 + $0x17] ss:$0 sm:$0xff]
    %v930 = vunpack.c.l.b16 %v912
    %v931 = vunpack.c.l.b16 %v913
    %v932 = vunpack.c.l.b16 %v914
    %v933 = vunpack.c.l.b16 %v915
    %v934 = vunpack.c.l.b16 %v916
    %v935 = vunpack.c.l.b16 %v917
    %v936 = vunpack.c.l.b16 %v918
    %v937 = vunpack.c.l.b16 %v919
    %v938 = vpack.c.b16 %v931, %v930
    %v939 = vpack.c.b16 %v933, %v932
    %v940 = vpack.c.b16 %v935, %v934
    %v941 = vpack.c.b16 %v937, %v936
    %v947 = vsel %vm155, %v920, 0
    %949 = vmatprep.subr.bf16.mxu0 0
    %950 = vmatpush1.bf16.msra.mxu0 0
    %951 = vmatprep.subr.bf16.mxu0 0
    %952 = vmatpush1.bf16.msra.mxu0 0
    %953 = vmatprep.subr.bf16.mxu0 0
    %954 = vmatpush1.bf16.msra.mxu0 0
    %955 = vmatprep.subr.bf16.mxu0 0
    %956 = vmatpush1.bf16.msra.mxu0 0
    %957 = vmatprep.subr.bf16.mxu0 0
    %958 = vmatpush1.bf16.msra.mxu0 %v941
    %959 = vmatprep.subr.bf16.mxu0 0
    %960 = vmatpush1.bf16.msra.mxu0 %v940
    %961 = vmatprep.subr.bf16.mxu0 0
    %962 = vmatpush1.bf16.msra.mxu0 %v939
    %963 = vmatprep.subr.bf16.mxu0 0
    %964 = vmatpush1.bf16.msra.mxu0 %v938
    %965 = vmatprep.subr.bf16.mxu0 0
    %966 = vmatpush2.bf16.msra.mxu0 0
    %967 = vmatprep.subr.bf16.mxu0 0
    %968 = vmatpush2.bf16.msra.mxu0 0
    %969 = vmatprep.subr.bf16.mxu0 0
    %970 = vmatpush2.bf16.msra.mxu0 0
    %971 = vmatprep.subr.bf16.mxu0 0
    %972 = vmatpush2.bf16.msra.mxu0 0
    %973 = vmatprep.subr.bf16.mxu0 0
    %974 = vmatpush2.bf16.msra.mxu0 0
    %975 = vmatprep.subr.bf16.mxu0 0
    %976 = vmatpush2.bf16.msra.mxu0 0
    %977 = vmatprep.subr.bf16.mxu0 0
    %978 = vmatpush2.bf16.msra.mxu0 0
    %979 = vmatprep.subr.bf16.mxu0 0
    %980 = vmatpush2.bf16.msra.mxu0 0
    %981 = vmatprep.mubr.bf16.mxu0 0
    %982 = vmatmul.mubr.bf16.gmra.mxu0 %v947
    %v983 = vpop.f32.mrf.mxu0
    %v984 = vadd.f32 %v921, %v983
    %v985 = vpop.f32.mrf.mxu0
    %v986 = vpop.f32.mrf.mxu0
    %v987 = vpop.f32.mrf.mxu0
    %988 = vdwg.mxu0
    %v989 = vld [vmem:[%s3 + $0x20] ss:$0 sm:$0xff]
    %v990 = vld [vmem:[%s3 + $0x21] ss:$0 sm:$0xff]
    %vm991 = vcmask 261120
    %v992 = vsel %vm991, %v984, 0.0
    %993 = vadd.xlane.f32.xlu0 %v992
    %v994 = vpop.xlane.xlu0 %993
    %v995 = vmul.f32 %v984, %v984
    %v996 = vsel %vm991, %v995, 0.0
    %997 = vadd.xlane.f32.xlu0 %v996
    %v998 = vpop.xlane.xlu0 %997
    %v999 = vmul.f32 %v994, 0.03125
    %v1000 = vmul.f32 %v998, 0.03125
    %v1001 = vmul.f32 %v999, %v999
    %v1002 = vsub.f32 %v1000, %v1001
    %v1003 = vsub.f32 %v984, %v999
    %v1004 = vadd.f32 %v1002, 1e-05
    %v1005 = vrsqrt.pop %v1004
    %v1006 = vmul.f32 %v1003, %v1005
    %v1007 = vmul.f32 %v1006, %v989
    %v1008 = vadd.f32 %v1007, %v990
    %v1009 = vmul.f32 %v1008, %v1008
    %v1010 = vsel %vm991, %v1009, 0.0
    %1011 = vadd.xlane.f32.xlu0 %v1010
    %v1012 = vpop.xlane.xlu0 %1011
    %v1013 = vmax.f32 %v1012, 1e-24
    %v1014 = vrsqrt.pop %v1013
    %v1015 = vmul.f32 %v1008, %v1014
    %1016 = vst.msk [vmem:[#allocation2] sm:$0xff] %vm991, %v1015
    // Predicated region
    $region18: #{tpu_custom_call.1} parent=1 // pred_check
      _
    $region19: #{tpu_custom_call.1} parent=1 // pred_check_branch
      %1018 = sbr.rel (0) target = $region21
    $region20: #{tpu_custom_call.1} parent=1 // pred_region
      %s1020 = ssub.s32 128, 128
      %1021 = vsyncadd [#allocation3], %s1020
      %s1023 = sshll.u32 [#allocation2], 4
      %s1024 = int_to_ptr.vmem [resolvable:$true] %s1023
      %1026 = dma.vmem_to_hbm [thread:$0]  %s1024, 128, %s4, [#allocation3]
    $region21: #{tpu_custom_call.1} parent=1 // pred_fallthru
      _
    // Predicated region
    $region22: #{tpu_custom_call.1} parent=1 // pred_check
      _
    $region23: #{tpu_custom_call.1} parent=1 // pred_check_branch
      %1028 = sbr.rel (0) target = $region25
    $region24: #{tpu_custom_call.1} parent=1 // pred_region
      %1029 = dma.done [#allocation3], 128
    $region25: #{tpu_custom_call.1} parent=1 // pred_fallthru
      _
    %1030 = vsyncpa [#allocation3], 1

</llo_original>
